<compile_context>
chip_gen: v5e
topology: v5e:2x2
jax: 0.10.0
libtpu: 0.0.40
codegen_flags: <defaults>
</compile_context>

<pallas_src>
import functools

import jax
import jax.numpy as jnp
from jax.experimental import pallas as pl
from jax.experimental.pallas import tpu as pltpu

_N_STATS = 8                            # rows of the (8, 128) stats slab; rows 0..5 used
_BLOCK_BYTE_BUDGET = 2 * 1024 * 1024    # ~2 MiB per input block (double-buffered by Pallas)


def _choose_tile_h(H, W, itemsize):
    """Largest H-tile that (a) divides H exactly, (b) keeps the second-minor block dim a
    multiple of 8 (layout-friendly), and (c) keeps one input block under ~2 MiB.
    Falls back to the whole plane if no such divisor exists (always correct)."""
    if H * W * itemsize <= _BLOCK_BYTE_BUDGET:
        return H
    for th in range(H - 1, 0, -1):
        if H % th != 0 or th % 8 != 0:
            continue
        if th * W * itemsize <= _BLOCK_BYTE_BUDGET:
            return th
    return H


def _stats_kernel(logits_ref, targets_ref, out_ref, *, alpha, gamma):
    # logits_ref: (1, 1, TH, W)   targets_ref: (1, TH, W)   out_ref: (1, 1, 8, 128)
    h = pl.program_id(2)

    # h is the innermost "arbitrary" reduction axis: the output block index is constant
    # across it, so out_ref stays resident in VMEM and doubles as the f32 accumulator.
    @pl.when(h == 0)
    def _():
        out_ref[...] = jnp.zeros_like(out_ref)

    x = logits_ref[0, 0, :, :].astype(jnp.float32)
    t = targets_ref[0, :, :].astype(jnp.float32)

    # One exp per pixel:  e = exp(-|x|)
    #   sigmoid(x) = 1/(1+e)   (x >= 0)   or   e/(1+e)   (x < 0)
    #   BCE(x, t)  = max(x, 0) - x*t + log1p(e)          (numerically stable form)
    e = jnp.exp(-jnp.abs(x))
    inv_1pe = pl.reciprocal(1.0 + e, approx=True)        # EUP vrcp slot, ~free
    p = jnp.where(x >= 0.0, inv_1pe, e * inv_1pe)
    ce = jnp.maximum(x, 0.0) - x * t + jnp.log1p(e)

    p_t = p * t + (1.0 - p) * (1.0 - t)
    one_m_pt = 1.0 - p_t
    if gamma == 2:
        mod = one_m_pt * one_m_pt
    else:
        mod = jnp.power(one_m_pt, gamma)
    focal = ce * mod
    if alpha >= 0:
        alpha_t = alpha * t + (1.0 - alpha) * (1.0 - t)
        focal = alpha_t * focal

    pred_pos = (x > 0.0).astype(jnp.float32)

    # NOTE: targets are assumed binary {0, 1} (guaranteed by the reference usage), so
    #   inter == sum(pred_pos * t) == sum(pred_pos * (t > 0))
    #   union == sum(pred_pos) + sum(t) - inter
    # which lets the JAX tail reconstruct union / t*pred without extra reductions here.
    s0 = jnp.sum(focal)            # focal loss, pixel sum
    s1 = jnp.sum(p * t)            # dice: sum(sigmoid(x) * t)
    s2 = jnp.sum(p)                # dice: sum(sigmoid(x))
    s3 = jnp.sum(t)                # dice / iou: sum(t)
    s4 = jnp.sum(pred_pos * t)     # iou: intersection ((x>0) & (t>0)), also sum(t*pred)
    s5 = jnp.sum(pred_pos)         # iou: |pred_binary|

    row = jax.lax.broadcasted_iota(jnp.int32, (_N_STATS, 128), 0)
    vals = jnp.where(row == 0, s0,
           jnp.where(row == 1, s1,
           jnp.where(row == 2, s2,
           jnp.where(row == 3, s3,
           jnp.where(row == 4, s4,
           jnp.where(row == 5, s5, 0.0))))))
    out_ref[...] += vals.reshape(1, 1, _N_STATS, 128)


def _mask_stats(mask_logits, targets, alpha, gamma):
    """Per-(batch, mask) reduction statistics, computed in the Pallas kernel.

    Inputs are streamed in their original dtypes (bf16/f32 logits, f32/uint8/bool
    targets); the f32 cast happens in-kernel.  Returns (B, M, 8) float32 stats.
    """
    B, M, H, W = mask_logits.shape
    itemsize = max(jnp.dtype(mask_logits.dtype).itemsize,
                   jnp.dtype(targets.dtype).itemsize)
    th = _choose_tile_h(H, W, itemsize)
    n_h = H // th

    kernel = functools.partial(_stats_kernel, alpha=float(alpha), gamma=gamma)
    out = pl.pallas_call(
        kernel,
        out_shape=jax.ShapeDtypeStruct((B, M, _N_STATS, 128), jnp.float32),
        grid_spec=pltpu.PrefetchScalarGridSpec(
            num_scalar_prefetch=0,
            grid=(B, M, n_h),
            in_specs=[
                pl.BlockSpec((1, 1, th, W), lambda b, m, h: (b, m, h, 0)),
                # shared target plane: broadcast over M via index_map (== torch repeat)
                pl.BlockSpec((1, th, W), lambda b, m, h: (b, h, 0)),
            ],
            out_specs=pl.BlockSpec((1, 1, _N_STATS, 128),
                                   lambda b, m, h: (b, m, 0, 0)),
        ),
        compiler_params=pltpu.CompilerParams(
            dimension_semantics=("parallel", "parallel", "arbitrary")),
    )(mask_logits, targets)
    return out[:, :, :, 0]  # (B, M, 8)


class FocalDiceIoULoss:
    """JAX/Pallas re-implementation of the PyTorch FocalDiceIoULoss forward pass.

    No learnable parameters (pure loss), so nothing to initialize.
    """

    def __init__(self, weight_focal=20.0, weight_dice=1.0, weight_iou=1.0,
                 focal_alpha=0.25, focal_gamma=2, iou_use_l1_loss=True,
                 multimask=False):
        self.weight_focal = weight_focal
        self.weight_dice = weight_dice
        self.weight_iou = weight_iou
        self.total_weights = weight_focal + weight_dice + weight_iou
        self.focal_alpha = focal_alpha
        self.focal_gamma = focal_gamma
        self.iou_use_l1_loss = iou_use_l1_loss
        self.multimask = multimask

    def __call__(self, mask_logits, targets, iou_predictions=None):
        assert mask_logits.ndim == 4
        if targets.ndim == 4:          # accept [B,1,H,W] targets too
            targets = targets[:, 0]
        B, M, H, W = mask_logits.shape
        num_objects = B

        stats = _mask_stats(mask_logits, targets,
                            self.focal_alpha, self.focal_gamma)
        focal_sum = stats[..., 0]      # (B, M)
        pt_sum = stats[..., 1]
        p_sum = stats[..., 2]
        t_sum = stats[..., 3]
        area_i = stats[..., 4]         # == sum(t * pred_binary) for binary targets
        pred_pos_sum = stats[..., 5]
        area_u = pred_pos_sum + t_sum - area_i
        t_pred_sum = area_i

        iou_err = None
        if iou_predictions is not None:
            actual_ious = area_i / jnp.maximum(area_u, 1.0)        # (B, M)
            diff = iou_predictions.astype(jnp.float32) - actual_ious
            iou_err = jnp.abs(diff) if self.iou_use_l1_loss else diff * diff

        if self.multimask:
            assert iou_predictions is not None
            hw = float(H * W)
            # per-(batch, mask) losses, already divided by num_objects (SAM2 conv.)
            focal_pm = focal_sum / hw / num_objects                # (B, M)
            dice_pm = (1.0 - (2.0 * pt_sum + 1.0) /
                       (p_sum + t_sum + 1.0)) / num_objects        # (B, M)
            iou_pm = iou_err / num_objects                         # (B, M)

            loss_combo = focal_pm * self.weight_focal + dice_pm * self.weight_dice
            best_loss_inds = jnp.argmin(loss_combo, axis=-1)       # (B,)
            bidx = jnp.arange(B)
            loss_mask = focal_pm[bidx, best_loss_inds].sum()
            loss_dice = dice_pm[bidx, best_loss_inds].sum()
            loss_iou = iou_pm.mean(axis=-1).sum()
            total_loss = (self.weight_focal * loss_mask
                          + self.weight_dice * loss_dice
                          + self.weight_iou * loss_iou)

            inter = t_pred_sum[bidx, best_loss_inds]
            union = (t_sum[bidx, best_loss_inds]
                     + pred_pos_sum[bidx, best_loss_inds] - inter)
            real_iou = (inter / (union + 1e-5)).mean()
            loss_dict = {
                "total_loss": total_loss,
                "focal_loss": loss_mask,
                "dice_loss": loss_dice,
                "iou_loss": loss_iou,
                "real_backward_mask_logits_index": best_loss_inds,
                "real_iou": real_iou,
            }
        else:
            # Non-multimask path (M == 1 in the reference usage; targets broadcast
            # over the mask channel, which is exact for M == 1).
            focal_loss = focal_sum.sum() / M / num_objects
            dice_loss_value = (1.0 - (2.0 * pt_sum + 1.0) /
                               (p_sum + t_sum + 1.0)).sum() / num_objects
            if iou_err is not None:
                iou_loss_value = iou_err.sum() / num_objects
            else:
                iou_loss_value = jnp.float32(0.0)
            total_loss = (self.weight_focal * focal_loss
                          + self.weight_dice * dice_loss_value
                          + self.weight_iou * iou_loss_value)
            loss_dict = {
                "total_loss": total_loss,
                "focal_loss": focal_loss,
                "dice_loss": dice_loss_value,
                "iou_loss": iou_loss_value,
            }
        return total_loss, loss_dict


if __name__ == "__main__":
    key = jax.random.PRNGKey(0)
    k1, k2, k3, k4, k5 = jax.random.split(key, 5)
    B, H, W = 2, 16, 16

    # --- default (single-mask, multimask=False) path, f32 logits ---
    mask_logits = 2.0 * jax.random.normal(k1, (B, 1, H, W), dtype=jnp.float32)
    targets = (jax.random.uniform(k2, (B, H, W)) > 0.5).astype(jnp.float32)
    iou_predictions = jax.random.uniform(k3, (B, 1), dtype=jnp.float32)

    loss_fn = FocalDiceIoULoss()
    total_loss, loss_dict = loss_fn(mask_logits, targets, iou_predictions)
    jax.block_until_ready(total_loss)

    # --- multimask path (M = 4), bf16 logits streamed with NO wrapper up-cast ---
    mask_logits_mm = (2.0 * jax.random.normal(k4, (B, 4, H, W))).astype(jnp.bfloat16)
    iou_predictions_mm = jax.random.uniform(k5, (B, 4), dtype=jnp.float32)
    loss_fn_mm = FocalDiceIoULoss(multimask=True)
    total_loss_mm, loss_dict_mm = loss_fn_mm(mask_logits_mm, targets,
                                             iou_predictions_mm)
    jax.block_until_ready(total_loss_mm)

    print("KERNEL_OK")
</pallas_src>

<mosaic_0001>
module attributes {stable_mosaic.version = 11 : i64} {
  func.func @_stats_kernel(%arg0: i32, %arg1: i32, %arg2: i32, %arg3: memref<1x1x16x16xf32, #tpu.memory_space<vmem>>, %arg4: memref<1x16x16xf32, #tpu.memory_space<vmem>>, %arg5: memref<1x1x8x128xf32, #tpu.memory_space<vmem>>) attributes {dimension_semantics = [#tpu.dimension_semantics<parallel>, #tpu.dimension_semantics<parallel>, #tpu.dimension_semantics<arbitrary>], iteration_bounds = array<i64: 2, 1, 1>, scalar_prefetch = 0 : i64, scratch_operands = 0 : i64, tpu.core_type = #tpu.core_type<tc>, window_params = [{transform_indices = @transform_0, window_bounds = array<i64: 1, 1, 16, 16>}, {transform_indices = @transform_1, window_bounds = array<i64: 1, 16, 16>}, {transform_indices = @transform_2, window_bounds = array<i64: 1, 1, 8, 128>}]} {
    %c0_i32 = arith.constant 0 : i32
    %0 = arith.cmpi eq, %arg2, %c0_i32 : i32
    %1 = arith.extui %0 : i1 to i32
    %c0_i32_0 = arith.constant 0 : i32
    %2 = arith.cmpi ne, %1, %c0_i32_0 : i32
    scf.if %2 {
      %cst_33 = arith.constant 0.000000e+00 : f32
      %103 = vector.broadcast %cst_33 : f32 to vector<1x1x8x128xf32>
      %c0_34 = arith.constant 0 : index
      %c0_35 = arith.constant 0 : index
      %c0_36 = arith.constant 0 : index
      %c0_37 = arith.constant 0 : index
      %104 = vector.load %arg5[%c0_34, %c0_35, %c0_36, %c0_37] : memref<1x1x8x128xf32, #tpu.memory_space<vmem>>, vector<1x1x8x128xf32>
      tpu.vector_store %arg5[%c0_34, %c0_35, %c0_36, %c0_37], %103 {strides = array<i32>} : memref<1x1x8x128xf32, #tpu.memory_space<vmem>>, vector<1x1x8x128xf32>,
    } else {
    }
    %c0 = arith.constant 0 : index
    %c0_1 = arith.constant 0 : index
    %c0_2 = arith.constant 0 : index
    %c0_3 = arith.constant 0 : index
    %3 = vector.load %arg3[%c0, %c0_1, %c0_2, %c0_3] : memref<1x1x16x16xf32, #tpu.memory_space<vmem>>, vector<1x1x16x16xf32>
    %4 = vector.shape_cast %3 : vector<1x1x16x16xf32> to vector<16x16xf32>
    %c0_4 = arith.constant 0 : index
    %c0_5 = arith.constant 0 : index
    %c0_6 = arith.constant 0 : index
    %5 = vector.load %arg4[%c0_4, %c0_5, %c0_6] : memref<1x16x16xf32, #tpu.memory_space<vmem>>, vector<1x16x16xf32>
    %6 = vector.shape_cast %5 : vector<1x16x16xf32> to vector<16x16xf32>
    %7 = math.absf %4 : vector<16x16xf32>
    %cst = arith.constant 0.000000e+00 : f32
    %8 = vector.broadcast %cst : f32 to vector<16x16xf32>
    %9 = arith.subf %8, %7 : vector<16x16xf32>
    %10 = math.exp %9 : vector<16x16xf32>
    %cst_7 = arith.constant 1.000000e+00 : f32
    %11 = vector.broadcast %cst_7 : f32 to vector<16x16xf32>
    %12 = arith.addf %11, %10 : vector<16x16xf32>
    %13 = tpu.reciprocal %12 {approx = true} : vector<16x16xf32> -> vector<16x16xf32>
    %cst_8 = arith.constant 0.000000e+00 : f32
    %14 = vector.broadcast %cst_8 : f32 to vector<16x16xf32>
    %15 = arith.cmpf oge, %4, %14 : vector<16x16xf32>
    %16 = arith.mulf %10, %13 : vector<16x16xf32>
    %17 = arith.select %15, %13, %16 : vector<16x16xi1>, vector<16x16xf32>
    %cst_9 = arith.constant 0.000000e+00 : f32
    %18 = vector.broadcast %cst_9 : f32 to vector<16x16xf32>
    %19 = arith.maximumf %4, %18 : vector<16x16xf32>
    %20 = arith.mulf %4, %6 : vector<16x16xf32>
    %21 = arith.subf %19, %20 : vector<16x16xf32>
    %22 = math.log1p %10 : vector<16x16xf32>
    %23 = arith.addf %21, %22 : vector<16x16xf32>
    %24 = arith.mulf %17, %6 : vector<16x16xf32>
    %cst_10 = arith.constant 1.000000e+00 : f32
    %25 = vector.broadcast %cst_10 : f32 to vector<16x16xf32>
    %26 = arith.subf %25, %17 : vector<16x16xf32>
    %cst_11 = arith.constant 1.000000e+00 : f32
    %27 = vector.broadcast %cst_11 : f32 to vector<16x16xf32>
    %28 = arith.subf %27, %6 : vector<16x16xf32>
    %29 = arith.mulf %26, %28 : vector<16x16xf32>
    %30 = arith.addf %24, %29 : vector<16x16xf32>
    %cst_12 = arith.constant 1.000000e+00 : f32
    %31 = vector.broadcast %cst_12 : f32 to vector<16x16xf32>
    %32 = arith.subf %31, %30 : vector<16x16xf32>
    %33 = arith.mulf %32, %32 : vector<16x16xf32>
    %34 = arith.mulf %23, %33 : vector<16x16xf32>
    %cst_13 = arith.constant 2.500000e-01 : f32
    %35 = vector.broadcast %cst_13 : f32 to vector<16x16xf32>
    %36 = arith.mulf %35, %6 : vector<16x16xf32>
    %cst_14 = arith.constant 1.000000e+00 : f32
    %37 = vector.broadcast %cst_14 : f32 to vector<16x16xf32>
    %38 = arith.subf %37, %6 : vector<16x16xf32>
    %cst_15 = arith.constant 7.500000e-01 : f32
    %39 = vector.broadcast %cst_15 : f32 to vector<16x16xf32>
    %40 = arith.mulf %39, %38 : vector<16x16xf32>
    %41 = arith.addf %36, %40 : vector<16x16xf32>
    %42 = arith.mulf %41, %34 : vector<16x16xf32>
    %cst_16 = arith.constant 0.000000e+00 : f32
    %43 = vector.broadcast %cst_16 : f32 to vector<16x16xf32>
    %44 = arith.cmpf ogt, %4, %43 : vector<16x16xf32>
    %45 = arith.extui %44 : vector<16x16xi1> to vector<16x16xi32>
    %46 = arith.sitofp %45 : vector<16x16xi32> to vector<16x16xf32>
    %47 = vector.shape_cast %42 : vector<16x16xf32> to vector<1x16x16xf32>
    %cst_17 = arith.constant dense<0.000000e+00> : vector<1xf32>
    %48 = vector.multi_reduction <add>, %47, %cst_17 [1, 2] : vector<1x16x16xf32> to vector<1xf32>
    %49 = vector.shape_cast %48 : vector<1xf32> to vector<1x1x1xf32>
    %50 = vector.extract %49[0, 0, 0] : f32 from vector<1x1x1xf32>
    %51 = arith.mulf %17, %6 : vector<16x16xf32>
    %52 = vector.shape_cast %51 : vector<16x16xf32> to vector<1x16x16xf32>
    %cst_18 = arith.constant dense<0.000000e+00> : vector<1xf32>
    %53 = vector.multi_reduction <add>, %52, %cst_18 [1, 2] : vector<1x16x16xf32> to vector<1xf32>
    %54 = vector.shape_cast %53 : vector<1xf32> to vector<1x1x1xf32>
    %55 = vector.extract %54[0, 0, 0] : f32 from vector<1x1x1xf32>
    %56 = vector.shape_cast %17 : vector<16x16xf32> to vector<1x16x16xf32>
    %cst_19 = arith.constant dense<0.000000e+00> : vector<1xf32>
    %57 = vector.multi_reduction <add>, %56, %cst_19 [1, 2] : vector<1x16x16xf32> to vector<1xf32>
    %58 = vector.shape_cast %57 : vector<1xf32> to vector<1x1x1xf32>
    %59 = vector.extract %58[0, 0, 0] : f32 from vector<1x1x1xf32>
    %60 = vector.shape_cast %6 : vector<16x16xf32> to vector<1x16x16xf32>
    %cst_20 = arith.constant dense<0.000000e+00> : vector<1xf32>
    %61 = vector.multi_reduction <add>, %60, %cst_20 [1, 2] : vector<1x16x16xf32> to vector<1xf32>
    %62 = vector.shape_cast %61 : vector<1xf32> to vector<1x1x1xf32>
    %63 = vector.extract %62[0, 0, 0] : f32 from vector<1x1x1xf32>
    %64 = arith.mulf %46, %6 : vector<16x16xf32>
    %65 = vector.shape_cast %64 : vector<16x16xf32> to vector<1x16x16xf32>
    %cst_21 = arith.constant dense<0.000000e+00> : vector<1xf32>
    %66 = vector.multi_reduction <add>, %65, %cst_21 [1, 2] : vector<1x16x16xf32> to vector<1xf32>
    %67 = vector.shape_cast %66 : vector<1xf32> to vector<1x1x1xf32>
    %68 = vector.extract %67[0, 0, 0] : f32 from vector<1x1x1xf32>
    %69 = vector.shape_cast %46 : vector<16x16xf32> to vector<1x16x16xf32>
    %cst_22 = arith.constant dense<0.000000e+00> : vector<1xf32>
    %70 = vector.multi_reduction <add>, %69, %cst_22 [1, 2] : vector<1x16x16xf32> to vector<1xf32>
    %71 = vector.shape_cast %70 : vector<1xf32> to vector<1x1x1xf32>
    %72 = vector.extract %71[0, 0, 0] : f32 from vector<1x1x1xf32>
    %73 = tpu.iota {dimensions = array<i32: 0>} : vector<8x128xi32>
    %c0_i32_23 = arith.constant 0 : i32
    %74 = vector.broadcast %c0_i32_23 : i32 to vector<8x128xi32>
    %75 = arith.cmpi eq, %73, %74 : vector<8x128xi32>
    %c1_i32 = arith.constant 1 : i32
    %76 = vector.broadcast %c1_i32 : i32 to vector<8x128xi32>
    %77 = arith.cmpi eq, %73, %76 : vector<8x128xi32>
    %c2_i32 = arith.constant 2 : i32
    %78 = vector.broadcast %c2_i32 : i32 to vector<8x128xi32>
    %79 = arith.cmpi eq, %73, %78 : vector<8x128xi32>
    %c3_i32 = arith.constant 3 : i32
    %80 = vector.broadcast %c3_i32 : i32 to vector<8x128xi32>
    %81 = arith.cmpi eq, %73, %80 : vector<8x128xi32>
    %c4_i32 = arith.constant 4 : i32
    %82 = vector.broadcast %c4_i32 : i32 to vector<8x128xi32>
    %83 = arith.cmpi eq, %73, %82 : vector<8x128xi32>
    %c5_i32 = arith.constant 5 : i32
    %84 = vector.broadcast %c5_i32 : i32 to vector<8x128xi32>
    %85 = arith.cmpi eq, %73, %84 : vector<8x128xi32>
    %cst_24 = arith.constant 0.000000e+00 : f32
    %86 = vector.broadcast %72 : f32 to vector<8x128xf32>
    %87 = vector.broadcast %cst_24 : f32 to vector<8x128xf32>
    %88 = arith.select %85, %86, %87 : vector<8x128xi1>, vector<8x128xf32>
    %89 = vector.broadcast %68 : f32 to vector<8x128xf32>
    %90 = arith.select %83, %89, %88 : vector<8x128xi1>, vector<8x128xf32>
    %91 = vector.broadcast %63 : f32 to vector<8x128xf32>
    %92 = arith.select %81, %91, %90 : vector<8x128xi1>, vector<8x128xf32>
    %93 = vector.broadcast %59 : f32 to vector<8x128xf32>
    %94 = arith.select %79, %93, %92 : vector<8x128xi1>, vector<8x128xf32>
    %95 = vector.broadcast %55 : f32 to vector<8x128xf32>
    %96 = arith.select %77, %95, %94 : vector<8x128xi1>, vector<8x128xf32>
    %97 = vector.broadcast %50 : f32 to vector<8x128xf32>
    %98 = arith.select %75, %97, %96 : vector<8x128xi1>, vector<8x128xf32>
    %c0_25 = arith.constant 0 : index
    %c0_26 = arith.constant 0 : index
    %c0_27 = arith.constant 0 : index
    %c0_28 = arith.constant 0 : index
    %99 = vector.load %arg5[%c0_25, %c0_26, %c0_27, %c0_28] : memref<1x1x8x128xf32, #tpu.memory_space<vmem>>, vector<1x1x8x128xf32>
    %100 = vector.shape_cast %98 : vector<8x128xf32> to vector<1x1x8x128xf32>
    %101 = arith.addf %99, %100 : vector<1x1x8x128xf32>
    %c0_29 = arith.constant 0 : index
    %c0_30 = arith.constant 0 : index
    %c0_31 = arith.constant 0 : index
    %c0_32 = arith.constant 0 : index
    %102 = vector.load %arg5[%c0_29, %c0_30, %c0_31, %c0_32] : memref<1x1x8x128xf32, #tpu.memory_space<vmem>>, vector<1x1x8x128xf32>
    tpu.vector_store %arg5[%c0_29, %c0_30, %c0_31, %c0_32], %101 {strides = array<i32>} : memref<1x1x8x128xf32, #tpu.memory_space<vmem>>, vector<1x1x8x128xf32>,
    return
  }
  func.func @transform_0(%arg0: i32, %arg1: i32, %arg2: i32) -> (i32, i32, i32, i32) {
    %c0_i32 = arith.constant 0 : i32
    %c0_i32_0 = arith.constant 0 : i32
    return %arg0, %arg1, %arg2, %c0_i32 : i32, i32, i32, i32
  }
  func.func @transform_1(%arg0: i32, %arg1: i32, %arg2: i32) -> (i32, i32, i32) {
    %c0_i32 = arith.constant 0 : i32
    %c0_i32_0 = arith.constant 0 : i32
    return %arg0, %arg2, %c0_i32 : i32, i32, i32
  }
  func.func @transform_2(%arg0: i32, %arg1: i32, %arg2: i32) -> (i32, i32, i32, i32) {
    %c0_i32 = arith.constant 0 : i32
    %c0_i32_0 = arith.constant 0 : i32
    %c0_i32_1 = arith.constant 0 : i32
    return %arg0, %arg1, %c0_i32, %c0_i32_0 : i32, i32, i32, i32
  }
}

</mosaic_0001>

<llo_original>
// kernel: tpu_custom_call.1
$region0: #{tpu_custom_call.1}
  #allocation0 [shape = 'u32[]', space=smem, size = 0x4, offset = 0x4, fixed_abs, tag = 'smem constant byte address 0x4 - core index']
  #allocation1 [shape = 'u32[72,128]{1,0:T(1,128)}', space=vmem, size = 0x9000, scoped, tag = 'internal scratch']
  %s0 = inlined_call_operand.hbm [shape: f32[2,1,16,16], index: 0, kind: input, shape index: {}]
  %s1 = inlined_call_operand.hbm [shape: f32[2,16,16], index: 1, kind: input, shape index: {}]
  %s2 = inlined_call_operand.hbm [shape: f32[2,1,8,128], index: 2, kind: output, shape index: {}]
  %s3 = sld [smem:[#allocation0]]
  $region53: #{tpu_custom_call.1} parent=0
    _
  %s5 = ssub.s32 1, %s3
  %s6 = scalar_select 0, %s5, %s3
  $region1: #{tpu_custom_call.1} parent=0
    #allocation2 [shape = 'u8[16384]{0}', space=vmem, size = 0x4000, scoped, tag = 'input window, operand 0']
    #allocation3 [shape = 's32[2]{0}', space=sflag, size = 0x8, scoped, tag = 'scoped memory for tpu_custom_call.1']
    #allocation4 [shape = 's32[2]{0}', space=sflag, size = 0x8, scoped, tag = 'scoped memory for tpu_custom_call.1']
    #allocation5 [shape = 'u8[16384]{0}', space=vmem, size = 0x4000, scoped, tag = 'input window, operand 1']
    #allocation6 [shape = 's32[2]{0}', space=sflag, size = 0x8, scoped, tag = 'scoped memory for tpu_custom_call.1']
    #allocation7 [shape = 'u8[8192]{0}', space=vmem, size = 0x2000, scoped, tag = 'output window, operand 0']
    %7 = vsyncpa [#allocation3], 0
    %s8 = scalar_lea.sflag [#allocation3], 1
    %9 = vsyncpa %s8, 0
    %10 = vsyncpa [#allocation6], 0
    %s11 = scalar_lea.sflag [#allocation6], 1
    %12 = vsyncpa %s11, 0
    %13 = vsyncpa [#allocation4], 0
    %s14 = scalar_lea.sflag [#allocation4], 1
    %15 = vsyncpa %s14, 0
    loop: start=0, step=1, limit=4
    $region2: #{tpu_custom_call.1} parent=1 // loop_pre_header
      _
    $region3: #{tpu_custom_call.1} parent=1 // loop_header
      %s17 = sphi 0, %s21
      %p18 = scmp.ge.s32.totalorder %s17, 4
      %s24 = sphi 0, %s43
      %s25 = sphi 0, %s39
      %s26 = sphi 0, %s35
      %s27 = sphi 0, %s24
      %s28 = sphi 0, %s25
      %s29 = sphi 0, %s26
      %s30 = sphi 0, %s27
      %s31 = sphi 0, %s28
      %s32 = sphi 0, %s29
      %s50 = sphi 0, %s52
      %s53 = sphi 0, %s50
      %s54 = sphi 0, %s53
      %s70 = sphi 0, %s54
      %s78 = sphi 0, %s80
      %s81 = sphi 0, %s78
      %s82 = sphi 0, %s81
      %s98 = sphi 0, %s82
      %s106 = sphi 0, %s108
      %s109 = sphi 0, %s106
      %s110 = sphi 0, %s109
      %s126 = sphi 0, %s110
    $region4: #{tpu_custom_call.1} parent=1 // loop_header_branch
      %20 = sbr.rel (%p18) target = $region8
    $region5: #{tpu_custom_call.1} parent=1 // loop_body
      %s22 = ssub.s32 %s17, 1
      %s23 = ssub.s32 %s17, 2
      %s33 = sadd.s32 1, %s26
      %p34 = scmp.ge.s32.totalorder %s33, 1
      %s35 = scalar_select %p34, 0, %s33
      %s36 = sadd.s32 1, %s25
      %s37 = scalar_select %p34, %s36, %s25
      %p38 = scmp.ge.s32.totalorder %s37, 1
      %s39 = scalar_select %p38, 0, %s37
      %s40 = sadd.s32 1, %s24
      %s41 = scalar_select %p38, %s40, %s24
      %p42 = scmp.ge.s32.totalorder %s41, 2
      %s43 = scalar_select %p42, 0, %s41
      %s44 = ssub.s32 %s24, %s43
      %s45 = ssub.s32 %s25, %s39
      %s46 = sor.u32 %s44, %s45
      %s47 = ssub.s32 %s26, %s35
      %s48 = sor.u32 %s46, %s47
      %p49 = scmp.eq.s32.totalorder %s48, 0
      %s51 = sadd.s32 %s50, 1
      %s52 = scalar_select %p49, %s50, %s51
      %p55 = pneg %p49
      %p56 = scmp.eq.s32.totalorder %s17, 1
      %p57 = por %p55, %p56
      %p58 = scmp.ne.s32.totalorder %s50, %s53
      %p59 = scmp.eq.s32.totalorder %s17, 0
      %p60 = por %p58, %p59
      %p61 = scmp.ne.s32.totalorder %s50, %s53
      %p62 = scmp.eq.s32.totalorder %s22, 1
      %p63 = por %p61, %p62
      %p64 = scmp.ne.s32.totalorder %s53, %s54
      %p65 = scmp.eq.s32.totalorder %s22, 0
      %p66 = por %p64, %p65
      %p67 = scmp.ne.s32.totalorder %s53, %s54
      %p68 = scmp.eq.s32.totalorder %s23, 1
      %p69 = por %p67, %p68
      %p71 = scmp.ne.s32.totalorder %s54, %s70
      %p72 = scmp.eq.s32.totalorder %s23, 0
      %p73 = por %p71, %p72
      %s74 = ssub.s32 %s24, %s43
      %s75 = ssub.s32 %s26, %s35
      %s76 = sor.u32 %s74, %s75
      %p77 = scmp.eq.s32.totalorder %s76, 0
      %s79 = sadd.s32 %s78, 1
      %s80 = scalar_select %p77, %s78, %s79
      %p83 = pneg %p77
      %p84 = scmp.eq.s32.totalorder %s17, 1
      %p85 = por %p83, %p84
      %p86 = scmp.ne.s32.totalorder %s78, %s81
      %p87 = scmp.eq.s32.totalorder %s17, 0
      %p88 = por %p86, %p87
      %p89 = scmp.ne.s32.totalorder %s78, %s81
      %p90 = scmp.eq.s32.totalorder %s22, 1
      %p91 = por %p89, %p90
      %p92 = scmp.ne.s32.totalorder %s81, %s82
      %p93 = scmp.eq.s32.totalorder %s22, 0
      %p94 = por %p92, %p93
      %p95 = scmp.ne.s32.totalorder %s81, %s82
      %p96 = scmp.eq.s32.totalorder %s23, 1
      %p97 = por %p95, %p96
      %p99 = scmp.ne.s32.totalorder %s82, %s98
      %p100 = scmp.eq.s32.totalorder %s23, 0
      %p101 = por %p99, %p100
      %s102 = ssub.s32 %s24, %s43
      %s103 = ssub.s32 %s25, %s39
      %s104 = sor.u32 %s102, %s103
      %p105 = scmp.eq.s32.totalorder %s104, 0
      %s107 = sadd.s32 %s106, 1
      %s108 = scalar_select %p105, %s106, %s107
      %p111 = pneg %p105
      %p112 = scmp.eq.s32.totalorder %s17, 1
      %p113 = por %p111, %p112
      %p114 = scmp.ne.s32.totalorder %s106, %s109
      %p115 = scmp.eq.s32.totalorder %s17, 0
      %p116 = por %p114, %p115
      %p117 = scmp.ne.s32.totalorder %s106, %s109
      %p118 = scmp.eq.s32.totalorder %s22, 1
      %p119 = por %p117, %p118
      %p120 = scmp.ne.s32.totalorder %s109, %s110
      %p121 = scmp.eq.s32.totalorder %s22, 0
      %p122 = por %p120, %p121
      %p123 = scmp.ne.s32.totalorder %s109, %s110
      %p124 = scmp.eq.s32.totalorder %s23, 1
      %p125 = por %p123, %p124
      %p127 = scmp.ne.s32.totalorder %s110, %s126
      %p128 = scmp.eq.s32.totalorder %s23, 0
      %p129 = por %p127, %p128
      %p130 = scmp.le.s32.totalorder 1, %s17
      %p131 = scmp.lt.s32.totalorder %s17, 3
      %p132 = pnand %p130, %p131
      %p133 = pneg %p132
      // Predicated region
      $region9: #{tpu_custom_call.1} parent=5 // pred_check
        _
      $region10: #{tpu_custom_call.1} parent=5 // pred_check_branch
        %135 = sbr.rel (%p132) target = $region12
      $region11: #{tpu_custom_call.1} parent=5 // pred_region
        %s136 = ssub.s32 %s17, 1
      $region12: #{tpu_custom_call.1} parent=5 // pred_fallthru
        _
      %p137 = scmp.lt.s32.totalorder %s17, 2
      // Predicated region
      $region13: #{tpu_custom_call.1} parent=5 // pred_check
        %p138 = pneg %p137
      $region14: #{tpu_custom_call.1} parent=5 // pred_check_branch
        %140 = sbr.rel (%p138) target = $region16
      $region15: #{tpu_custom_call.1} parent=5 // pred_region
        // Predicated region
        $region17: #{tpu_custom_call.1} parent=15 // pred_check
          %p141 = pneg %p60
        $region18: #{tpu_custom_call.1} parent=15 // pred_check_branch
          %143 = sbr.rel (%p141) target = $region20
        $region19: #{tpu_custom_call.1} parent=15 // pred_region
          %s144 = sand.u32 %s50, 1
          %s145 = scalar_lea.sflag [#allocation3], %s144
          %s146 = sand.u32 %s50, 1
          %s147 = smul.addr %s146, 16
          %s148 = scalar_lea.vmem [#allocation2], %s147
          %s149 = smul.u32 2, %s26
          %151 = vsyncadd %s145, 0
          %s152 = smul.addr %s25, 2
          %s153 = sadd.s32 %s149, %s152
          %s154 = smul.addr %s24, 2
          %s155 = sadd.s32 %s153, %s154
          %s156 = smul.addr %s155, 8
          %s157 = scalar_lea.hbm %s0, %s156
          %s158 = sshll.u32 %s157, 4
          %s159 = int_to_ptr.hbm [resolvable:$true] %s158
          %s160 = sshll.u32 %s148, 4
          %s161 = int_to_ptr.vmem [resolvable:$true] %s160
          %166 = dma.hbm_to_vmem [thread:$0]  %s159, 256, %s161, %s145, 128, 128, 8
        $region20: #{tpu_custom_call.1} parent=15 // pred_fallthru
          _
        // Predicated region
        $region21: #{tpu_custom_call.1} parent=15 // pred_check
          %p167 = pneg %p88
        $region22: #{tpu_custom_call.1} parent=15 // pred_check_branch
          %169 = sbr.rel (%p167) target = $region24
        $region23: #{tpu_custom_call.1} parent=15 // pred_region
          %s170 = sand.u32 %s78, 1
          %s171 = scalar_lea.sflag [#allocation6], %s170
          %s172 = sand.u32 %s78, 1
          %s173 = smul.addr %s172, 16
          %s174 = scalar_lea.vmem [#allocation5], %s173
          %s175 = smul.u32 2, %s26
          %177 = vsyncadd %s171, 0
          %s178 = smul.addr %s24, 2
          %s179 = sadd.s32 %s175, %s178
          %s180 = smul.addr %s179, 8
          %s181 = scalar_lea.hbm %s1, %s180
          %s182 = sshll.u32 %s181, 4
          %s183 = int_to_ptr.hbm [resolvable:$true] %s182
          %s184 = sshll.u32 %s174, 4
          %s185 = int_to_ptr.vmem [resolvable:$true] %s184
          %190 = dma.hbm_to_vmem [thread:$0]  %s183, 256, %s185, %s171, 128, 128, 8
        $region24: #{tpu_custom_call.1} parent=15 // pred_fallthru
          _
      $region16: #{tpu_custom_call.1} parent=5 // pred_fallthru
        _
      %p191 = scmp.le.s32.totalorder 1, %s17
      %p192 = scmp.lt.s32.totalorder %s17, 3
      %p193 = pnand %p191, %p192
      %p194 = pneg %p193
      // Predicated region
      $region25: #{tpu_custom_call.1} parent=5 // pred_check
        _
      $region26: #{tpu_custom_call.1} parent=5 // pred_check_branch
        %196 = sbr.rel (%p193) target = $region28
      $region27: #{tpu_custom_call.1} parent=5 // pred_region
        %s197 = ssub.s32 %s17, 1
        %s198 = sand.u32 %s53, 1
        %s199 = scalar_lea.sflag [#allocation3], %s198
        %s200 = sand.u32 %s53, 1
        %s201 = smul.addr %s200, 16
        %s202 = scalar_lea.vmem [#allocation2], %s201
        // Predicated region
        $region29: #{tpu_custom_call.1} parent=27 // pred_check
          %p203 = pneg %p66
        $region30: #{tpu_custom_call.1} parent=27 // pred_check_branch
          %205 = sbr.rel (%p203) target = $region32
        $region31: #{tpu_custom_call.1} parent=27 // pred_region
          %207 = dma.done %s199, 256
        $region32: #{tpu_custom_call.1} parent=27 // pred_fallthru
          _
        %s208 = sand.u32 %s81, 1
        %s209 = scalar_lea.sflag [#allocation6], %s208
        %s210 = sand.u32 %s81, 1
        %s211 = smul.addr %s210, 16
        %s212 = scalar_lea.vmem [#allocation5], %s211
        // Predicated region
        $region33: #{tpu_custom_call.1} parent=27 // pred_check
          %p213 = pneg %p94
        $region34: #{tpu_custom_call.1} parent=27 // pred_check_branch
          %215 = sbr.rel (%p213) target = $region36
        $region35: #{tpu_custom_call.1} parent=27 // pred_region
          %217 = dma.done %s209, 256
        $region36: #{tpu_custom_call.1} parent=27 // pred_fallthru
          _
        %s218 = sand.u32 %s53, 1
        %s219 = scalar_lea.sflag [#allocation3], %s218
        %s220 = sand.u32 %s53, 1
        %s221 = smul.addr %s220, 16
        %s222 = scalar_lea.vmem [#allocation2], %s221
        %p223 = pneg %p66
        %p224 = pneg %p63
        %s225 = sand.u32 %s81, 1
        %s226 = scalar_lea.sflag [#allocation6], %s225
        %s227 = sand.u32 %s81, 1
        %s228 = smul.addr %s227, 16
        %s229 = scalar_lea.vmem [#allocation5], %s228
        %p230 = pneg %p94
        %p231 = pneg %p91
        %p232 = pneg %p122
        %p233 = pneg %p119
        %s234 = sand.u32 %s109, 1
        %s235 = scalar_lea.sflag [#allocation4], %s234
        %s236 = sand.u32 %s109, 1
        %s237 = smul.addr %s236, 8
        %s238 = scalar_lea.vmem [#allocation7], %s237
        %s239 = smul.u32 2, %s29
        %s240 = smul.u32 2, %s29
        %p241 = scmp.eq.s32.totalorder %s29, 0
        // Predicated region
        $region37: #{tpu_custom_call.1} parent=27 // pred_check
          %p242 = pneg %p241
        $region38: #{tpu_custom_call.1} parent=27 // pred_check_branch
          %244 = sbr.rel (%p242) target = $region40
        $region39: #{tpu_custom_call.1} parent=27 // pred_region
          %245 = vst [vmem:[%s238] sm:$0xff] 0.0
        $region40: #{tpu_custom_call.1} parent=27 // pred_fallthru
          _
        %v246 = vld [vmem:[%s202] sm:$0xff]
        %v247 = vld [vmem:[%s202 + $0x8] sm:$0xff]
        %v248 = vld [vmem:[%s212] sm:$0xff]
        %v249 = vld [vmem:[%s212 + $0x8] sm:$0xff]
        %v250 = vand.u32 2147483647, %v246
        %v251 = vand.u32 2147483647, %v247
        %v252 = vsub.f32 0.0, %v250
        %v253 = vsub.f32 0.0, %v251
        %v254 = vmul.f32 %v252, 1.442695
        %v255 = vpow.pop %v254
        %v256 = vmul.f32 %v253, 1.442695
        %v257 = vpow.pop %v256
        %v258 = vadd.f32 %v255, 1.0
        %v259 = vadd.f32 %v257, 1.0
        %v260 = vrcp.pop %v258
        %v261 = vrcp.pop %v259
        %vm262 = vcmp.ge.f32.partialorder %v246, 0.0
        %vm263 = vcmp.ge.f32.partialorder %v247, 0.0
        %v264 = vmul.f32 %v255, %v260
        %v265 = vmul.f32 %v257, %v261
        %v266 = vsel %vm262, %v260, %v264
        %v267 = vsel %vm263, %v261, %v265
        %v268 = vmax.f32 %v246, 0.0
        %v269 = vmax.f32 %v247, 0.0
        %v270 = vmul.f32 %v246, %v248
        %v271 = vmul.f32 %v247, %v249
        %v272 = vsub.f32 %v268, %v270
        %v273 = vsub.f32 %v269, %v271
        %v274 = vadd.f32 %v255, 1.0
        %v275 = vlog2.pop %v274
        %v276 = vmul.f32 %v275, 0.6931472
        %v277 = vmul.f32 -0.5, %v255
        %v278 = vadd.f32 %v277, 1.0
        %v279 = vmul.f32 %v278, %v255
        %v280 = vand.u32 2147483647, %v255
        %vm281 = vcmp.lt.f32.partialorder %v280, 0.0004427343
        %v282 = vsel %vm281, %v279, %v276
        %v283 = vadd.f32 %v257, 1.0
        %v284 = vlog2.pop %v283
        %v285 = vmul.f32 %v284, 0.6931472
        %v286 = vmul.f32 -0.5, %v257
        %v287 = vadd.f32 %v286, 1.0
        %v288 = vmul.f32 %v287, %v257
        %v289 = vand.u32 2147483647, %v257
        %vm290 = vcmp.lt.f32.partialorder %v289, 0.0004427343
        %v291 = vsel %vm290, %v288, %v285
        %v292 = vadd.f32 %v272, %v282
        %v293 = vadd.f32 %v273, %v291
        %v294 = vmul.f32 %v266, %v248
        %v295 = vmul.f32 %v267, %v249
        %v296 = vsub.f32 1.0, %v266
        %v297 = vsub.f32 1.0, %v267
        %v298 = vsub.f32 1.0, %v248
        %v299 = vsub.f32 1.0, %v249
        %v300 = vmul.f32 %v296, %v298
        %v301 = vmul.f32 %v297, %v299
        %v302 = vadd.f32 %v294, %v300
        %v303 = vadd.f32 %v295, %v301
        %v304 = vsub.f32 1.0, %v302
        %v305 = vsub.f32 1.0, %v303
        %v306 = vmul.f32 %v304, %v304
        %v307 = vmul.f32 %v305, %v305
        %v308 = vmul.f32 %v292, %v306
        %v309 = vmul.f32 %v293, %v307
        %v310 = vmul.f32 %v248, 0.25
        %v311 = vmul.f32 %v249, 0.25
        %v312 = vmul.f32 %v298, 0.75
        %v313 = vmul.f32 %v299, 0.75
        %v314 = vadd.f32 %v310, %v312
        %v315 = vadd.f32 %v311, %v313
        %v316 = vmul.f32 %v314, %v308
        %v317 = vmul.f32 %v315, %v309
        %vm318 = vcmp.gt.f32.partialorder %v246, 0.0
        %vm319 = vcmp.gt.f32.partialorder %v247, 0.0
        %v320 = vsel %vm318, 1, 0
        %v321 = vsel %vm319, 1, 0
        %v322 = vcvt.s32.f32 %v320
        %v323 = vcvt.s32.f32 %v321
        %vm324 = vcmask 130048
        %v325 = vsel %vm324, %v316, 0.0
        %v326 = vsel %vm324, %v317, 0.0
        %v327 = vadd.f32 %v325, %v326
        %328 = vadd.xlane.f32.xlu0 %v327
        %v329 = vpop.xlane.xlu0 %328
        %v330 = vrot.slane %v329, 4
        %v331 = vadd.f32 %v329, %v330
        %v332 = vrot.slane %v331, 2
        %v333 = vadd.f32 %v331, %v332
        %v334 = vrot.slane %v333, 1
        %v335 = vadd.f32 %v333, %v334
        %s336 = vtos %v335
        %v337 = vsel %vm324, %v294, 0.0
        %v338 = vsel %vm324, %v295, 0.0
        %v339 = vadd.f32 %v337, %v338
        %340 = vadd.xlane.f32.xlu0 %v339
        %v341 = vpop.xlane.xlu0 %340
        %v342 = vrot.slane %v341, 4
        %v343 = vadd.f32 %v341, %v342
        %v344 = vrot.slane %v343, 2
        %v345 = vadd.f32 %v343, %v344
        %v346 = vrot.slane %v345, 1
        %v347 = vadd.f32 %v345, %v346
        %s348 = vtos %v347
        %v349 = vsel %vm324, %v266, 0.0
        %v350 = vsel %vm324, %v267, 0.0
        %v351 = vadd.f32 %v349, %v350
        %352 = vadd.xlane.f32.xlu0 %v351
        %v353 = vpop.xlane.xlu0 %352
        %v354 = vrot.slane %v353, 4
        %v355 = vadd.f32 %v353, %v354
        %v356 = vrot.slane %v355, 2
        %v357 = vadd.f32 %v355, %v356
        %v358 = vrot.slane %v357, 1
        %v359 = vadd.f32 %v357, %v358
        %s360 = vtos %v359
        %v361 = vsel %vm324, %v248, 0.0
        %v362 = vsel %vm324, %v249, 0.0
        %v363 = vadd.f32 %v361, %v362
        %364 = vadd.xlane.f32.xlu0 %v363
        %v365 = vpop.xlane.xlu0 %364
        %v366 = vrot.slane %v365, 4
        %v367 = vadd.f32 %v365, %v366
        %v368 = vrot.slane %v367, 2
        %v369 = vadd.f32 %v367, %v368
        %v370 = vrot.slane %v369, 1
        %v371 = vadd.f32 %v369, %v370
        %s372 = vtos %v371
        %v373 = vmul.f32 %v322, %v248
        %v374 = vmul.f32 %v323, %v249
        %v375 = vsel %vm324, %v373, 0.0
        %v376 = vsel %vm324, %v374, 0.0
        %v377 = vadd.f32 %v375, %v376
        %378 = vadd.xlane.f32.xlu0 %v377
        %v379 = vpop.xlane.xlu0 %378
        %v380 = vrot.slane %v379, 4
        %v381 = vadd.f32 %v379, %v380
        %v382 = vrot.slane %v381, 2
        %v383 = vadd.f32 %v381, %v382
        %v384 = vrot.slane %v383, 1
        %v385 = vadd.f32 %v383, %v384
        %s386 = vtos %v385
        %v387 = vsel %vm324, %v322, 0.0
        %v388 = vsel %vm324, %v323, 0.0
        %v389 = vadd.f32 %v387, %v388
        %390 = vadd.xlane.f32.xlu0 %v389
        %v391 = vpop.xlane.xlu0 %390
        %v392 = vrot.slane %v391, 4
        %v393 = vadd.f32 %v391, %v392
        %v394 = vrot.slane %v393, 2
        %v395 = vadd.f32 %v393, %v394
        %v396 = vrot.slane %v395, 1
        %v397 = vadd.f32 %v395, %v396
        %s398 = vtos %v397
        %v399 = vlaneseq
        %v400 = vshrl.u32 %v399, 7
        %vm401 = vcmp.eq.s32.totalorder %v400, 0
        %vm402 = vcmp.eq.s32.totalorder %v400, 1
        %vm403 = vcmp.eq.s32.totalorder %v400, 2
        %vm404 = vcmp.eq.s32.totalorder %v400, 3
        %vm405 = vcmp.eq.s32.totalorder %v400, 4
        %vm406 = vcmp.eq.s32.totalorder %v400, 5
        %v407 = vstv %s398
        %v408 = vsel %vm406, %v407, 0.0
        %v409 = vstv %s386
        %v410 = vsel %vm405, %v409, %v408
        %v411 = vstv %s372
        %v412 = vsel %vm404, %v411, %v410
        %v413 = vstv %s360
        %v414 = vsel %vm403, %v413, %v412
        %v415 = vstv %s348
        %v416 = vsel %vm402, %v415, %v414
        %v417 = vstv %s336
        %v418 = vsel %vm401, %v417, %v416
        %v419 = vld [vmem:[%s238] sm:$0xff]
        %v420 = vadd.f32 %v419, %v418
        %421 = vst [vmem:[%s238] sm:$0xff] %v420
        %s422 = sand.u32 %s109, 1
        %s423 = scalar_lea.sflag [#allocation4], %s422
        %s424 = sand.u32 %s109, 1
        %s425 = smul.addr %s424, 8
        %s426 = scalar_lea.vmem [#allocation7], %s425
        // Predicated region
        $region41: #{tpu_custom_call.1} parent=27 // pred_check
          %p427 = pneg %p119
        $region42: #{tpu_custom_call.1} parent=27 // pred_check_branch
          %429 = sbr.rel (%p427) target = $region44
        $region43: #{tpu_custom_call.1} parent=27 // pred_region
          %431 = vsyncadd %s423, 0
          %s432 = sadd.s32 %s28, %s27
          %s433 = smul.addr %s432, 8
          %s434 = scalar_lea.hbm %s2, %s433
          %s436 = sshll.u32 %s426, 4
          %s437 = int_to_ptr.vmem [resolvable:$true] %s436
          %s438 = sshll.u32 %s434, 4
          %s439 = int_to_ptr.hbm [resolvable:$true] %s438
          %441 = dma.vmem_to_hbm [thread:$0]  %s437, 128, %s439, %s423
        $region44: #{tpu_custom_call.1} parent=27 // pred_fallthru
          _
      $region28: #{tpu_custom_call.1} parent=5 // pred_fallthru
        _
      %p442 = scmp.le.s32.totalorder 2, %s17
      // Predicated region
      $region45: #{tpu_custom_call.1} parent=5 // pred_check
        %p443 = pneg %p442
      $region46: #{tpu_custom_call.1} parent=5 // pred_check_branch
        %445 = sbr.rel (%p443) target = $region48
      $region47: #{tpu_custom_call.1} parent=5 // pred_region
        %s446 = ssub.s32 %s17, 2
        // Predicated region
        $region49: #{tpu_custom_call.1} parent=47 // pred_check
          %p447 = pneg %p125
        $region50: #{tpu_custom_call.1} parent=47 // pred_check_branch
          %449 = sbr.rel (%p447) target = $region52
        $region51: #{tpu_custom_call.1} parent=47 // pred_region
          %s450 = sand.u32 %s110, 1
          %s451 = scalar_lea.sflag [#allocation4], %s450
          %s452 = sand.u32 %s110, 1
          %s453 = smul.addr %s452, 8
          %s454 = scalar_lea.vmem [#allocation7], %s453
          %456 = dma.done %s451, 128
        $region52: #{tpu_custom_call.1} parent=47 // pred_fallthru
          _
      $region48: #{tpu_custom_call.1} parent=5 // pred_fallthru
        _
    $region6: #{tpu_custom_call.1} parent=1 // loop_footer
      %s21 = sadd.s32 1, %s17
    $region7: #{tpu_custom_call.1} parent=1 // loop_footer_branch
      %16 = sbr.rel target = $region3
    $region8: #{tpu_custom_call.1} parent=1 // loop_exit
      _
    %457 = vsyncpa [#allocation3], 1
    %s458 = scalar_lea.sflag [#allocation3], 1
    %459 = vsyncpa %s458, 1
    %460 = vsyncpa [#allocation6], 1
    %s461 = scalar_lea.sflag [#allocation6], 1
    %462 = vsyncpa %s461, 1
    %463 = vsyncpa [#allocation4], 1
    %s464 = scalar_lea.sflag [#allocation4], 1
    %465 = vsyncpa %s464, 1

</llo_original>
